<compile_context>
chip_gen: v5e
topology: v5e:2x2
jax: 0.10.0
libtpu: 0.0.40
codegen_flags: <defaults>
</compile_context>

<pallas_src>
import jax
import jax.numpy as jnp
import numpy as np
from jax.experimental import pallas as pl
from jax.experimental.pallas import tpu as pltpu

NEG_SLOPE = 0.01  # torch.nn.LeakyReLU default negative_slope


def _leaky_relu(x):
    return jnp.where(x > 0, x, NEG_SLOPE * x)


def mlp_kernel(xT_ref, w1_ref, b1_ref, w2_ref, b2_ref, o_ref):
    # Layer 1: Linear(7 -> 64) + LeakyReLU, batch on lanes.
    #   (64, 7) @ (7, TILE_N) -> (64, TILE_N), f32 accumulation on the MXU.
    h = jnp.dot(w1_ref[...], xT_ref[...], preferred_element_type=jnp.float32)
    h = _leaky_relu(h + b1_ref[...])
    # Dropout(p=0.0) is identity.
    # Layer 2: Linear(64 -> 2) + LeakyReLU.
    #   (2, 64) @ (64, TILE_N) -> (2, TILE_N)
    y = jnp.dot(w2_ref[...], h, preferred_element_type=jnp.float32)
    y = _leaky_relu(y + b2_ref[...])
    # Dropout(p=0.0) is identity.
    o_ref[...] = y.astype(o_ref.dtype)


def mlp_forward(x, w1, b1, w2, b2, *, tile_n=1024):
    """x: (N, 7); w1: (64, 7); b1: (64,); w2: (2, 64); b2: (2,).

    Weights are in PyTorch nn.Linear (out_features, in_features) layout; the
    kernel uses them directly (W @ x^T), no transpose needed.
    """
    n, f_in = x.shape
    f_hidden, _ = w1.shape
    f_out, _ = w2.shape

    # Pad batch up to a lane multiple and cap the tile at the padded size,
    # then round the padded batch to a whole number of tiles (pl.cdiv grid).
    n_lane = max(128, ((n + 127) // 128) * 128)
    tile_n = min(tile_n, n_lane)
    grid_n = pl.cdiv(n_lane, tile_n)
    n_pad = grid_n * tile_n

    # Batch on the lane axis: (7, N_pad). Zero-pad the batch remainder.
    xT = jnp.pad(x, ((0, n_pad - n), (0, 0))).T

    out_t = pl.pallas_call(
        mlp_kernel,
        out_shape=jax.ShapeDtypeStruct((f_out, n_pad), x.dtype),
        grid_spec=pltpu.PrefetchScalarGridSpec(
            num_scalar_prefetch=0,
            grid=(grid_n,),
            in_specs=[
                # x tile marches along the batch (lane) axis -> pipelined DMA.
                pl.BlockSpec((f_in, tile_n), lambda i: (0, i)),
                # Weights / biases: constant index_map -> resident in VMEM.
                pl.BlockSpec((f_hidden, f_in), lambda i: (0, 0)),
                pl.BlockSpec((f_hidden, 1), lambda i: (0, 0)),
                pl.BlockSpec((f_out, f_hidden), lambda i: (0, 0)),
                pl.BlockSpec((f_out, 1), lambda i: (0, 0)),
            ],
            out_specs=pl.BlockSpec((f_out, tile_n), lambda i: (0, i)),
        ),
        compiler_params=pltpu.CompilerParams(
            dimension_semantics=("parallel",),   # shards across TCs on v7x
            vmem_limit_bytes=32 * 1024 * 1024,   # safe on v7x's 64 MiB VMEM
        ),
    )(xT, w1, b1.reshape(f_hidden, 1), w2, b2.reshape(f_out, 1))

    # Strip padding and return in the PyTorch (N, out_features) layout.
    return out_t[:, :n].T


def init_linear_params(key, fan_in, fan_out):
    """Deterministic init mimicking nn.Linear (kaiming-uniform-ish bounds)."""
    kw, kb = jax.random.split(key)
    bound = 1.0 / np.sqrt(fan_in)
    w = jax.random.uniform(kw, (fan_out, fan_in), jnp.float32, -bound, bound)
    b = jax.random.uniform(kb, (fan_out,), jnp.float32, -bound, bound)
    return w, b


if __name__ == "__main__":
    key = jax.random.PRNGKey(0)
    k_x, k_l1, k_l2 = jax.random.split(key, 3)

    size_list = [7, 64, 2]
    batch = 8

    x = jax.random.normal(k_x, (batch, size_list[0]), dtype=jnp.float32)

    w1, b1 = init_linear_params(k_l1, size_list[0], size_list[1])  # (64,7), (64,)
    w2, b2 = init_linear_params(k_l2, size_list[1], size_list[2])  # (2,64), (2,)

    out = mlp_forward(x, w1, b1, w2, b2)
    out = jax.block_until_ready(out)

    # Pure-JAX reference of the same forward pass.
    h_ref = jnp.dot(x, w1.T) + b1
    h_ref = jnp.where(h_ref > 0, h_ref, NEG_SLOPE * h_ref)
    y_ref = jnp.dot(h_ref, w2.T) + b2
    y_ref = jnp.where(y_ref > 0, y_ref, NEG_SLOPE * y_ref)
    np.testing.assert_allclose(np.asarray(out), np.asarray(y_ref), rtol=1e-5, atol=1e-5)

    print("KERNEL_OK")
</pallas_src>

<mosaic_0001>
module attributes {stable_mosaic.version = 11 : i64} {
  func.func @mlp_kernel(%arg0: i32, %arg1: memref<7x128xf32, #tpu.memory_space<vmem>>, %arg2: memref<64x7xf32, #tpu.memory_space<vmem>>, %arg3: memref<64x1xf32, #tpu.memory_space<vmem>>, %arg4: memref<2x64xf32, #tpu.memory_space<vmem>>, %arg5: memref<2x1xf32, #tpu.memory_space<vmem>>, %arg6: memref<2x128xf32, #tpu.memory_space<vmem>>) attributes {dimension_semantics = [#tpu.dimension_semantics<parallel>], iteration_bounds = array<i64: 1>, scalar_prefetch = 0 : i64, scratch_operands = 0 : i64, tpu.core_type = #tpu.core_type<tc>, window_params = [{transform_indices = @transform_0, window_bounds = array<i64: 7, 128>}, {pipeline_mode = #tpu.pipeline_mode<synchronous>, transform_indices = @transform_1, window_bounds = array<i64: 64, 7>}, {pipeline_mode = #tpu.pipeline_mode<synchronous>, transform_indices = @transform_2, window_bounds = array<i64: 64, 1>}, {pipeline_mode = #tpu.pipeline_mode<synchronous>, transform_indices = @transform_3, window_bounds = array<i64: 2, 64>}, {pipeline_mode = #tpu.pipeline_mode<synchronous>, transform_indices = @transform_4, window_bounds = array<i64: 2, 1>}, {transform_indices = @transform_5, window_bounds = array<i64: 2, 128>}]} {
    %c0 = arith.constant 0 : index
    %c0_0 = arith.constant 0 : index
    %0 = vector.load %arg2[%c0, %c0_0] : memref<64x7xf32, #tpu.memory_space<vmem>>, vector<64x7xf32>
    %c0_1 = arith.constant 0 : index
    %c0_2 = arith.constant 0 : index
    %1 = vector.load %arg1[%c0_1, %c0_2] : memref<7x128xf32, #tpu.memory_space<vmem>>, vector<7x128xf32>
    %cst = arith.constant dense<0.000000e+00> : vector<64x128xf32>
    %2 = tpu.matmul %0, %1, %cst {dimension_numbers = #tpu.dot_dimension_numbers<[1], [0], [0], [1], [0, 0, 1, 1], [], []>} : vector<64x7xf32>, vector<7x128xf32>, vector<64x128xf32> -> vector<64x128xf32>
    %c0_3 = arith.constant 0 : index
    %c0_4 = arith.constant 0 : index
    %3 = vector.load %arg3[%c0_3, %c0_4] : memref<64x1xf32, #tpu.memory_space<vmem>>, vector<64x1xf32>
    %4 = vector.broadcast %3 : vector<64x1xf32> to vector<64x128xf32>
    %5 = arith.addf %2, %4 : vector<64x128xf32>
    %cst_5 = arith.constant 0.000000e+00 : f32
    %6 = vector.broadcast %cst_5 : f32 to vector<64x128xf32>
    %7 = arith.cmpf ogt, %5, %6 : vector<64x128xf32>
    %cst_6 = arith.constant 0.00999999977 : f32
    %8 = vector.broadcast %cst_6 : f32 to vector<64x128xf32>
    %9 = arith.mulf %8, %5 : vector<64x128xf32>
    %10 = arith.select %7, %5, %9 : vector<64x128xi1>, vector<64x128xf32>
    %c0_7 = arith.constant 0 : index
    %c0_8 = arith.constant 0 : index
    %11 = vector.load %arg4[%c0_7, %c0_8] : memref<2x64xf32, #tpu.memory_space<vmem>>, vector<2x64xf32>
    %cst_9 = arith.constant dense<0.000000e+00> : vector<2x128xf32>
    %12 = tpu.matmul %11, %10, %cst_9 {dimension_numbers = #tpu.dot_dimension_numbers<[1], [0], [0], [1], [0, 0, 1, 1], [], []>} : vector<2x64xf32>, vector<64x128xf32>, vector<2x128xf32> -> vector<2x128xf32>
    %c0_10 = arith.constant 0 : index
    %c0_11 = arith.constant 0 : index
    %13 = vector.load %arg5[%c0_10, %c0_11] : memref<2x1xf32, #tpu.memory_space<vmem>>, vector<2x1xf32>
    %14 = vector.broadcast %13 : vector<2x1xf32> to vector<2x128xf32>
    %15 = arith.addf %12, %14 : vector<2x128xf32>
    %cst_12 = arith.constant 0.000000e+00 : f32
    %16 = vector.broadcast %cst_12 : f32 to vector<2x128xf32>
    %17 = arith.cmpf ogt, %15, %16 : vector<2x128xf32>
    %cst_13 = arith.constant 0.00999999977 : f32
    %18 = vector.broadcast %cst_13 : f32 to vector<2x128xf32>
    %19 = arith.mulf %18, %15 : vector<2x128xf32>
    %20 = arith.select %17, %15, %19 : vector<2x128xi1>, vector<2x128xf32>
    %c0_14 = arith.constant 0 : index
    %c0_15 = arith.constant 0 : index
    %21 = vector.load %arg6[%c0_14, %c0_15] : memref<2x128xf32, #tpu.memory_space<vmem>>, vector<2x128xf32>
    tpu.vector_store %arg6[%c0_14, %c0_15], %20 {strides = array<i32>} : memref<2x128xf32, #tpu.memory_space<vmem>>, vector<2x128xf32>,
    return
  }
  func.func @transform_0(%arg0: i32) -> (i32, i32) {
    %c0_i32 = arith.constant 0 : i32
    %c0_i32_0 = arith.constant 0 : i32
    return %c0_i32, %arg0 : i32, i32
  }
  func.func @transform_1(%arg0: i32) -> (i32, i32) {
    %c0_i32 = arith.constant 0 : i32
    %c0_i32_0 = arith.constant 0 : i32
    %c0_i32_1 = arith.constant 0 : i32
    return %c0_i32, %c0_i32_0 : i32, i32
  }
  func.func @transform_2(%arg0: i32) -> (i32, i32) {
    %c0_i32 = arith.constant 0 : i32
    %c0_i32_0 = arith.constant 0 : i32
    %c0_i32_1 = arith.constant 0 : i32
    return %c0_i32, %c0_i32_0 : i32, i32
  }
  func.func @transform_3(%arg0: i32) -> (i32, i32) {
    %c0_i32 = arith.constant 0 : i32
    %c0_i32_0 = arith.constant 0 : i32
    %c0_i32_1 = arith.constant 0 : i32
    return %c0_i32, %c0_i32_0 : i32, i32
  }
  func.func @transform_4(%arg0: i32) -> (i32, i32) {
    %c0_i32 = arith.constant 0 : i32
    %c0_i32_0 = arith.constant 0 : i32
    %c0_i32_1 = arith.constant 0 : i32
    return %c0_i32, %c0_i32_0 : i32, i32
  }
  func.func @transform_5(%arg0: i32) -> (i32, i32) {
    %c0_i32 = arith.constant 0 : i32
    %c0_i32_0 = arith.constant 0 : i32
    return %c0_i32, %arg0 : i32, i32
  }
}

</mosaic_0001>

<llo_original>
// kernel: tpu_custom_call.1
$region0: #{tpu_custom_call.1}
  #allocation0 [shape = 'u32[]', space=smem, size = 0x4, offset = 0x4, fixed_abs, tag = 'smem constant byte address 0x4 - core index']
  #allocation1 [shape = 'u32[72,128]{1,0:T(1,128)}', space=vmem, size = 0x9000, scoped, tag = 'internal scratch']
  %s0 = inlined_call_operand.vmem [shape: f32[7,128], index: 0, kind: input, shape index: {}]
  %s1 = inlined_call_operand.vmem [shape: f32[64,7], index: 1, kind: input, shape index: {}]
  %s2 = inlined_call_operand.vmem [shape: f32[64,1], index: 2, kind: input, shape index: {}]
  %s3 = inlined_call_operand.vmem [shape: f32[2,64], index: 3, kind: input, shape index: {}]
  %s4 = inlined_call_operand.vmem [shape: f32[2,1], index: 4, kind: input, shape index: {}]
  %s5 = inlined_call_operand.hbm [shape: f32[2,128], index: 5, kind: output, shape index: {}]
  %s6 = sld [smem:[#allocation0]]
  $region30: #{tpu_custom_call.1} parent=0
    _
  %s8 = ssub.s32 1, %s6
  %s9 = scalar_select 0, %s8, %s6
  $region1: #{tpu_custom_call.1} parent=0
    #allocation2 [shape = 'u8[1024]{0}', space=vmem, size = 0x400, scoped, tag = 'output window, operand 0, single buffered']
    #allocation3 [shape = 's32[1]{0}', space=sflag, size = 0x4, scoped, tag = 'scoped memory for tpu_custom_call.1']
    %10 = vsyncpa [#allocation3], 0
    // Predicated region
    $region2: #{tpu_custom_call.1} parent=1 // pred_check
      _
    $region3: #{tpu_custom_call.1} parent=1 // pred_check_branch
      %12 = sbr.rel (0) target = $region5
    $region4: #{tpu_custom_call.1} parent=1 // pred_region
      _
    $region5: #{tpu_custom_call.1} parent=1 // pred_fallthru
      _
    // Predicated region
    $region6: #{tpu_custom_call.1} parent=1 // pred_check
      _
    $region7: #{tpu_custom_call.1} parent=1 // pred_check_branch
      %14 = sbr.rel (0) target = $region9
    $region8: #{tpu_custom_call.1} parent=1 // pred_region
      _
    $region9: #{tpu_custom_call.1} parent=1 // pred_fallthru
      _
    // Predicated region
    $region10: #{tpu_custom_call.1} parent=1 // pred_check
      _
    $region11: #{tpu_custom_call.1} parent=1 // pred_check_branch
      %16 = sbr.rel (0) target = $region13
    $region12: #{tpu_custom_call.1} parent=1 // pred_region
      _
    $region13: #{tpu_custom_call.1} parent=1 // pred_fallthru
      _
    // Predicated region
    $region14: #{tpu_custom_call.1} parent=1 // pred_check
      _
    $region15: #{tpu_custom_call.1} parent=1 // pred_check_branch
      %18 = sbr.rel (0) target = $region17
    $region16: #{tpu_custom_call.1} parent=1 // pred_region
      _
    $region17: #{tpu_custom_call.1} parent=1 // pred_fallthru
      _
    // Predicated region
    $region18: #{tpu_custom_call.1} parent=1 // pred_check
      _
    $region19: #{tpu_custom_call.1} parent=1 // pred_check_branch
      %20 = sbr.rel (0) target = $region21
    $region20: #{tpu_custom_call.1} parent=1 // pred_region
      _
    $region21: #{tpu_custom_call.1} parent=1 // pred_fallthru
      _
    %v21 = vld [vmem:[%s1] sm:$0xff]
    %v22 = vld [vmem:[%s1 + $0x8] sm:$0xff]
    %v23 = vld [vmem:[%s1 + $0x10] sm:$0xff]
    %v24 = vld [vmem:[%s1 + $0x18] sm:$0xff]
    %v25 = vld [vmem:[%s1 + $0x20] sm:$0xff]
    %v26 = vld [vmem:[%s1 + $0x28] sm:$0xff]
    %v27 = vld [vmem:[%s1 + $0x30] sm:$0xff]
    %v28 = vld [vmem:[%s1 + $0x38] sm:$0xff]
    %v29 = vld [vmem:[%s0] sm:$0x7f]
    %v30 = vld [vmem:[%s2] sm:$0xff]
    %v31 = vld [vmem:[%s2 + $0x8] sm:$0xff]
    %v32 = vld [vmem:[%s2 + $0x10] sm:$0xff]
    %v33 = vld [vmem:[%s2 + $0x18] sm:$0xff]
    %v34 = vld [vmem:[%s2 + $0x20] sm:$0xff]
    %v35 = vld [vmem:[%s2 + $0x28] sm:$0xff]
    %v36 = vld [vmem:[%s2 + $0x30] sm:$0xff]
    %v37 = vld [vmem:[%s2 + $0x38] sm:$0xff]
    %39 = vset.pattern.permute.xlu0 0
    %40 = vperm.xlu0 %39, %v30
    %v41 = vpop.permute.xlu0 %40
    %44 = vset.pattern.permute.xlu0 0
    %45 = vperm.xlu0 %44, %v31
    %v46 = vpop.permute.xlu0 %45
    %49 = vset.pattern.permute.xlu0 0
    %50 = vperm.xlu0 %49, %v32
    %v51 = vpop.permute.xlu0 %50
    %54 = vset.pattern.permute.xlu0 0
    %55 = vperm.xlu0 %54, %v33
    %v56 = vpop.permute.xlu0 %55
    %59 = vset.pattern.permute.xlu0 0
    %60 = vperm.xlu0 %59, %v34
    %v61 = vpop.permute.xlu0 %60
    %64 = vset.pattern.permute.xlu0 0
    %65 = vperm.xlu0 %64, %v35
    %v66 = vpop.permute.xlu0 %65
    %69 = vset.pattern.permute.xlu0 0
    %70 = vperm.xlu0 %69, %v36
    %v71 = vpop.permute.xlu0 %70
    %74 = vset.pattern.permute.xlu0 0
    %75 = vperm.xlu0 %74, %v37
    %v76 = vpop.permute.xlu0 %75
    %vm78 = vcmask 56320
    %v80 = vsel %vm78, %v21, 0
    %v83 = vsel %vm78, %v22, 0
    %v86 = vsel %vm78, %v23, 0
    %v89 = vsel %vm78, %v24, 0
    %v92 = vsel %vm78, %v25, 0
    %v95 = vsel %vm78, %v26, 0
    %v98 = vsel %vm78, %v27, 0
    %v101 = vsel %vm78, %v28, 0
    %vm103 = vcmask 1046528
    %v105 = vsel %vm103, %v29, 0
    %107 = vmatpush.msra.mxu0 0.0
    %108 = vmatpush.msra.mxu0 0.0
    %109 = vmatpush.msra.mxu0 0.0
    %110 = vmatpush.msra.mxu0 0.0
    %111 = vmatpush.msra.mxu0 0.0
    %112 = vmatpush.msra.mxu0 0.0
    %113 = vmatpush.msra.mxu0 0.0
    %114 = vmatpush.msra.mxu0 0.0
    %115 = vmatpush.msra.mxu0 0.0
    %116 = vmatpush.msra.mxu0 0.0
    %117 = vmatpush.msra.mxu0 0.0
    %118 = vmatpush.msra.mxu0 0.0
    %119 = vmatpush.msra.mxu0 0.0
    %120 = vmatpush.msra.mxu0 0.0
    %121 = vmatpush.msra.mxu0 0.0
    %122 = vmatpush.msra.mxu0 %v105
    %123 = vmatmul.f32.gmra.mxu0 %v80
    %v124 = vpop.f32.mrf.mxu0
    %v125 = vadd.f32 %v41, %v124
    %126 = vmatmul.f32.gmra.mxu0 %v83
    %v127 = vpop.f32.mrf.mxu0
    %v128 = vadd.f32 %v46, %v127
    %129 = vmatmul.f32.gmra.mxu0 %v86
    %v130 = vpop.f32.mrf.mxu0
    %v131 = vadd.f32 %v51, %v130
    %132 = vmatmul.f32.gmra.mxu0 %v89
    %v133 = vpop.f32.mrf.mxu0
    %v134 = vadd.f32 %v56, %v133
    %135 = vmatmul.f32.gmra.mxu0 %v92
    %v136 = vpop.f32.mrf.mxu0
    %v137 = vadd.f32 %v61, %v136
    %138 = vmatmul.f32.gmra.mxu0 %v95
    %v139 = vpop.f32.mrf.mxu0
    %v140 = vadd.f32 %v66, %v139
    %141 = vmatmul.f32.gmra.mxu0 %v98
    %v142 = vpop.f32.mrf.mxu0
    %v143 = vadd.f32 %v71, %v142
    %144 = vmatmul.f32.gmra.mxu0 %v101
    %v145 = vpop.f32.mrf.mxu0
    %v146 = vadd.f32 %v76, %v145
    %147 = vdwg.mxu0
    %vm148 = vcmp.gt.f32.partialorder %v125, 0.0
    %vm149 = vcmp.gt.f32.partialorder %v128, 0.0
    %vm150 = vcmp.gt.f32.partialorder %v131, 0.0
    %vm151 = vcmp.gt.f32.partialorder %v134, 0.0
    %vm152 = vcmp.gt.f32.partialorder %v137, 0.0
    %vm153 = vcmp.gt.f32.partialorder %v140, 0.0
    %vm154 = vcmp.gt.f32.partialorder %v143, 0.0
    %vm155 = vcmp.gt.f32.partialorder %v146, 0.0
    %v156 = vmul.f32 %v125, 0.01
    %v157 = vmul.f32 %v128, 0.01
    %v158 = vmul.f32 %v131, 0.01
    %v159 = vmul.f32 %v134, 0.01
    %v160 = vmul.f32 %v137, 0.01
    %v161 = vmul.f32 %v140, 0.01
    %v162 = vmul.f32 %v143, 0.01
    %v163 = vmul.f32 %v146, 0.01
    %v164 = vsel %vm148, %v125, %v156
    %v165 = vsel %vm149, %v128, %v157
    %v166 = vsel %vm150, %v131, %v158
    %v167 = vsel %vm151, %v134, %v159
    %v168 = vsel %vm152, %v137, %v160
    %v169 = vsel %vm153, %v140, %v161
    %v170 = vsel %vm154, %v143, %v162
    %v171 = vsel %vm155, %v146, %v163
    %v172 = vld [vmem:[%s3] sm:$0x3]
    %v173 = vld [vmem:[%s4] sm:$0x3]
    %175 = vset.pattern.permute.xlu0 0
    %176 = vperm.xlu0 %175, %v173
    %v177 = vpop.permute.xlu0 %176
    %vm179 = vcmask 523264
    %v181 = vsel %vm179, %v172, 0
    %183 = vmatpush.msra.mxu0 0.0
    %184 = vmatpush.msra.mxu0 0.0
    %185 = vmatpush.msra.mxu0 0.0
    %186 = vmatpush.msra.mxu0 0.0
    %187 = vmatpush.msra.mxu0 0.0
    %188 = vmatpush.msra.mxu0 0.0
    %189 = vmatpush.msra.mxu0 0.0
    %190 = vmatpush.msra.mxu0 0.0
    %191 = vmatpush.msra.mxu0 %v171
    %192 = vmatpush.msra.mxu0 %v170
    %193 = vmatpush.msra.mxu0 %v169
    %194 = vmatpush.msra.mxu0 %v168
    %195 = vmatpush.msra.mxu0 %v167
    %196 = vmatpush.msra.mxu0 %v166
    %197 = vmatpush.msra.mxu0 %v165
    %198 = vmatpush.msra.mxu0 %v164
    %199 = vmatmul.f32.gmra.mxu0 %v181
    %v200 = vpop.f32.mrf.mxu0
    %v201 = vadd.f32 %v177, %v200
    %202 = vdwg.mxu0
    %vm203 = vcmp.gt.f32.partialorder %v201, 0.0
    %v204 = vmul.f32 %v201, 0.01
    %v205 = vsel %vm203, %v201, %v204
    %206 = vst [vmem:[#allocation2] sm:$0x3] %v205
    // Predicated region
    $region22: #{tpu_custom_call.1} parent=1 // pred_check
      _
    $region23: #{tpu_custom_call.1} parent=1 // pred_check_branch
      %208 = sbr.rel (0) target = $region25
    $region24: #{tpu_custom_call.1} parent=1 // pred_region
      %210 = vsyncadd [#allocation3], 0
      %s212 = sshll.u32 [#allocation2], 4
      %s213 = int_to_ptr.vmem [resolvable:$true] %s212
      %s214 = sshll.u32 %s5, 4
      %s215 = int_to_ptr.hbm [resolvable:$true] %s214
      %217 = dma.vmem_to_hbm [thread:$0]  %s213, 32, %s215, [#allocation3]
    $region25: #{tpu_custom_call.1} parent=1 // pred_fallthru
      _
    // Predicated region
    $region26: #{tpu_custom_call.1} parent=1 // pred_check
      _
    $region27: #{tpu_custom_call.1} parent=1 // pred_check_branch
      %219 = sbr.rel (0) target = $region29
    $region28: #{tpu_custom_call.1} parent=1 // pred_region
      %221 = dma.done [#allocation3], 32
    $region29: #{tpu_custom_call.1} parent=1 // pred_fallthru
      _
    %222 = vsyncpa [#allocation3], 1

</llo_original>
